<compile_context>
chip_gen: v7x
topology: tpu7x:2x2x1
jax: 0.10.0
libtpu: 0.0.40
codegen_flags: <defaults>
</compile_context>

<pallas_src>
import functools

import jax
import jax.numpy as jnp
from jax.experimental import pallas as pl
from jax.experimental.pallas import tpu as pltpu

_LANES = 128


def _kl_loss_kernel(pred_ref, targ_ref, out_ref, *, sub_rows, valid_rows):
    """One grid step: per-lane partial KL sums of one (block_rows, 128) block."""
    b = pl.program_id(0)
    block_rows, lanes = pred_ref.shape
    n_sub = block_rows // sub_rows
    block_row0 = b * block_rows

    def reduce_block(masked):
        if masked:
            # Absolute row index of every element in a sub-tile (offset by the
            # block start); hoisted out of the inner loop.
            rows = (jax.lax.broadcasted_iota(jnp.int32, (sub_rows, lanes), 0)
                    + block_row0)

        def body(s, acc):
            r0 = pl.multiple_of(s * sub_rows, sub_rows)
            p = pred_ref[pl.ds(r0, sub_rows), :].astype(jnp.float32)
            t = targ_ref[pl.ds(r0, sub_rows), :].astype(jnp.float32)
            valid = t > 0.0
            if masked:
                valid = jnp.logical_and(valid, (rows + r0) < valid_rows)
            # torch F.kl_div pointwise: t * (log t - log p); t <= 0 contributes
            # exactly 0 (NaN/inf in the unselected branch is discarded).
            elem = jnp.where(valid, t * (jnp.log(t) - jnp.log(p)), 0.0)
            return acc + jnp.sum(elem.reshape(sub_rows // 8, 8, lanes), axis=0)

        acc0 = jnp.zeros((8, lanes), jnp.float32)
        return jax.lax.fori_loop(0, n_sub, body, acc0, unroll=True)

    if valid_rows % block_rows == 0:
        # Every block is full: no row-bounds masking anywhere (fast path only).
        out_ref[...] = reduce_block(masked=False)
    else:
        full_block = (block_row0 + block_rows) <= valid_rows

        @pl.when(full_block)
        def _():
            out_ref[...] = reduce_block(masked=False)

        @pl.when(jnp.logical_not(full_block))
        def _():
            out_ref[...] = reduce_block(masked=True)


def _kl_pointwise(p, t):
    p = p.astype(jnp.float32)
    t = t.astype(jnp.float32)
    return jnp.where(t > 0.0, t * (jnp.log(t) - jnp.log(p)), 0.0)


def kl_loss(pred, target, loss_weight=1.0, block_rows=8192, sub_rows=256):
    """Pallas TPU implementation of KLLoss.forward(pred, target)."""
    assert pred.shape == target.shape
    lanes = _LANES

    n = 1
    for d in pred.shape:
        n *= d

    pred_flat = pred.reshape(-1)
    targ_flat = target.reshape(-1)

    align = 8 * lanes                      # 1024-element (one (8,128) vreg) unit
    n_main = (n // align) * align

    # Unaligned remainder (< 1024 elements): plain-JAX sum, added afterwards.
    # TODO(synk): in the unaligned case the main-region slice below may
    # materialize one copy; a BoundedSlice tail block would avoid it.
    tail = jnp.float32(0.0)
    if n_main < n:
        tail = jnp.sum(_kl_pointwise(pred_flat[n_main:], targ_flat[n_main:]))

    if n_main == 0:
        return tail * loss_weight

    m = n_main // lanes                    # rows; multiple of 8

    # block_rows must be a multiple of sub_rows and <= m.
    if m <= sub_rows:
        sub_rows = m
        block_rows = m
    else:
        block_rows = min(block_rows, (m // sub_rows) * sub_rows)
    total_blocks = -(-m // block_rows)

    if n_main < n:
        pred2 = pred_flat[:n_main].reshape(m, lanes)
        targ2 = targ_flat[:n_main].reshape(m, lanes)
    else:
        pred2 = pred_flat.reshape(m, lanes)
        targ2 = targ_flat.reshape(m, lanes)

    kernel = functools.partial(_kl_loss_kernel, sub_rows=sub_rows, valid_rows=m)

    partials = pl.pallas_call(
        kernel,
        out_shape=jax.ShapeDtypeStruct((total_blocks * 8, lanes), jnp.float32),
        grid_spec=pltpu.PrefetchScalarGridSpec(
            num_scalar_prefetch=0,
            grid=(total_blocks,),
            in_specs=[
                pl.BlockSpec((block_rows, lanes), lambda b: (b, 0)),
                pl.BlockSpec((block_rows, lanes), lambda b: (b, 0)),
            ],
            out_specs=pl.BlockSpec((8, lanes), lambda b: (b, 0)),
        ),
        compiler_params=pltpu.CompilerParams(
            dimension_semantics=("parallel",),
            vmem_limit_bytes=32 * 1024 * 1024,
        ),
    )(pred2, targ2)

    # Final tiny cross-lane reduce + weight scale outside the kernel.
    return (jnp.sum(partials) + tail) * loss_weight


def _reference_kl_loss(pred, target, loss_weight=1.0):
    """Pure-JAX reference matching torch F.kl_div(pred.log(), target, 'sum')."""
    return jnp.sum(_kl_pointwise(pred, target)) * loss_weight


def _check(pred, target, loss_weight=1.0):
    out = jax.block_until_ready(kl_loss(pred, target, loss_weight=loss_weight))
    ref = _reference_kl_loss(pred, target, loss_weight=loss_weight)
    assert jnp.allclose(out, ref, rtol=1e-5, atol=1e-5), (out, ref)


if __name__ == "__main__":
    key = jax.random.PRNGKey(0)
    k1, k2, k3, k4, k5, k6 = jax.random.split(key, 6)

    # 1) Module-shaped input (B, C, H, W), channel-softmax distributions.
    B, C, H, W = 2, 4, 16, 16
    pred = jax.nn.softmax(jax.random.normal(k1, (B, C, H, W), jnp.float32), axis=1)
    target = jax.nn.softmax(jax.random.normal(k2, (B, C, H, W), jnp.float32), axis=1)
    _check(pred, target, loss_weight=1.0)

    # 2) Partial last block -> exercises the masked (slow-path) tail block.
    p2 = jax.nn.softmax(jax.random.normal(k3, (1, 1, 272, 128), jnp.float32), axis=-1)
    t2 = jax.nn.softmax(jax.random.normal(k4, (1, 1, 272, 128), jnp.float32), axis=-1)
    _check(p2, t2, loss_weight=0.5)

    # 3) Numel not a multiple of 1024 -> exercises the plain-JAX remainder.
    p3 = jax.nn.softmax(jax.random.normal(k5, (2, 3, 15, 17), jnp.float32), axis=-1)
    t3 = jax.nn.softmax(jax.random.normal(k6, (2, 3, 15, 17), jnp.float32), axis=-1)
    _check(p3, t3, loss_weight=2.0)

    print("KERNEL_OK")
</pallas_src>

<mosaic_0001>
module attributes {stable_mosaic.version = 11 : i64} {
  func.func @_kl_loss_kernel(%arg0: i32, %arg1: memref<16x128xf32, #tpu.memory_space<vmem>>, %arg2: memref<16x128xf32, #tpu.memory_space<vmem>>, %arg3: memref<8x128xf32, #tpu.memory_space<vmem>>) attributes {dimension_semantics = [#tpu.dimension_semantics<parallel>], iteration_bounds = array<i64: 1>, scalar_prefetch = 0 : i64, scratch_operands = 0 : i64, tpu.core_type = #tpu.core_type<tc>, window_params = [{transform_indices = @transform_0, window_bounds = array<i64: 16, 128>}, {transform_indices = @transform_1, window_bounds = array<i64: 16, 128>}, {transform_indices = @transform_2, window_bounds = array<i64: 8, 128>}]} {
    %cst = arith.constant 0.000000e+00 : f32
    %0 = vector.broadcast %cst : f32 to vector<8x128xf32>
    %c0_i32 = arith.constant 0 : i32
    %c16_i32 = arith.constant 16 : i32
    %1 = arith.muli %c0_i32, %c16_i32 : i32
    %2 = tpu.assume_multiple %1, 16 : i32
    %3 = arith.index_cast %2 : i32 to index
    %c0 = arith.constant 0 : index
    %4 = vector.load %arg1[%3, %c0] : memref<16x128xf32, #tpu.memory_space<vmem>>, vector<16x128xf32>
    %5 = arith.index_cast %2 : i32 to index
    %c0_0 = arith.constant 0 : index
    %6 = vector.load %arg2[%5, %c0_0] : memref<16x128xf32, #tpu.memory_space<vmem>>, vector<16x128xf32>
    %cst_1 = arith.constant 0.000000e+00 : f32
    %7 = vector.broadcast %cst_1 : f32 to vector<16x128xf32>
    %8 = arith.cmpf ogt, %6, %7 : vector<16x128xf32>
    %9 = math.log %6 : vector<16x128xf32>
    %10 = math.log %4 : vector<16x128xf32>
    %11 = arith.subf %9, %10 : vector<16x128xf32>
    %12 = arith.mulf %6, %11 : vector<16x128xf32>
    %cst_2 = arith.constant 0.000000e+00 : f32
    %13 = vector.broadcast %cst_2 : f32 to vector<16x128xf32>
    %14 = arith.select %8, %12, %13 : vector<16x128xi1>, vector<16x128xf32>
    %15 = vector.shape_cast %14 : vector<16x128xf32> to vector<2x8x128xf32>
    %cst_3 = arith.constant dense<0.000000e+00> : vector<8x128xf32>
    %16 = vector.multi_reduction <add>, %15, %cst_3 [0] : vector<2x8x128xf32> to vector<8x128xf32>
    %17 = arith.addf %0, %16 : vector<8x128xf32>
    %c1_i32 = arith.constant 1 : i32
    %c0_4 = arith.constant 0 : index
    %c0_5 = arith.constant 0 : index
    %18 = vector.load %arg3[%c0_4, %c0_5] : memref<8x128xf32, #tpu.memory_space<vmem>>, vector<8x128xf32>
    tpu.vector_store %arg3[%c0_4, %c0_5], %17 {strides = array<i32>} : memref<8x128xf32, #tpu.memory_space<vmem>>, vector<8x128xf32>,
    return
  }
  func.func @transform_0(%arg0: i32) -> (i32, i32) {
    %c0_i32 = arith.constant 0 : i32
    %c0_i32_0 = arith.constant 0 : i32
    return %arg0, %c0_i32 : i32, i32
  }
  func.func @transform_1(%arg0: i32) -> (i32, i32) {
    %c0_i32 = arith.constant 0 : i32
    %c0_i32_0 = arith.constant 0 : i32
    return %arg0, %c0_i32 : i32, i32
  }
  func.func @transform_2(%arg0: i32) -> (i32, i32) {
    %c0_i32 = arith.constant 0 : i32
    %c0_i32_0 = arith.constant 0 : i32
    return %arg0, %c0_i32 : i32, i32
  }
}

</mosaic_0001>

<llo_original>
// kernel: tpu_custom_call.1
$region0: #{tpu_custom_call.1}
  #allocation0 [shape = 'u32[]', space=smem, size = 0x4, offset = 0x4, fixed_abs, tag = 'smem constant byte address 0x4 - core index']
  #allocation1 [shape = 'u32[144,128]{1,0:T(1,128)}', space=vmem, size = 0x12000, scoped, tag = 'internal scratch']
  %s0 = inlined_call_operand.hbm [shape: f32[16,128], index: 0, kind: input, shape index: {}]
  %s1 = inlined_call_operand.hbm [shape: f32[16,128], index: 1, kind: input, shape index: {}]
  %s2 = inlined_call_operand.hbm [shape: f32[8,128], index: 2, kind: output, shape index: {}]
  %s3 = sld [smem:[#allocation0]]
  $region26: #{tpu_custom_call.1} parent=0
    _
  %s5 = ssub.s32 1, %s3
  %s6 = scalar_select 0, %s5, %s3
  $region1: #{tpu_custom_call.1} parent=0
    #allocation2 [shape = 'u8[8192]{0}', space=vmem, size = 0x2000, scoped, tag = 'input window, operand 0, single buffered']
    #allocation3 [shape = 's32[1]{0}', space=sflag, size = 0x4, scoped, tag = 'scoped memory for tpu_custom_call.1']
    #allocation4 [shape = 's32[1]{0}', space=sflag, size = 0x4, scoped, tag = 'scoped memory for tpu_custom_call.1']
    #allocation5 [shape = 'u8[8192]{0}', space=vmem, size = 0x2000, scoped, tag = 'input window, operand 1, single buffered']
    #allocation6 [shape = 's32[1]{0}', space=sflag, size = 0x4, scoped, tag = 'scoped memory for tpu_custom_call.1']
    #allocation7 [shape = 'u8[4096]{0}', space=vmem, size = 0x1000, scoped, tag = 'output window, operand 0, single buffered']
    %7 = vsyncpa [#allocation3], 0
    %8 = vsyncpa [#allocation6], 0
    %9 = vsyncpa [#allocation4], 0
    // Predicated region
    $region2: #{tpu_custom_call.1} parent=1 // pred_check
      _
    $region3: #{tpu_custom_call.1} parent=1 // pred_check_branch
      %11 = sbr.rel (0) target = $region5
    $region4: #{tpu_custom_call.1} parent=1 // pred_region
      %s13 = ssub.s32 256, 256
      %14 = vsyncadd [#allocation3], %s13
      %s15 = sshll.u32 [#allocation2], 4
      %s16 = int_to_ptr.vmem [resolvable:$true] %s15
      %21 = dma.hbm_to_vmem [thread:$0]  %s0, 256, %s16, [#allocation3], 128, 128, 8
    $region5: #{tpu_custom_call.1} parent=1 // pred_fallthru
      _
    // Predicated region
    $region6: #{tpu_custom_call.1} parent=1 // pred_check
      _
    $region7: #{tpu_custom_call.1} parent=1 // pred_check_branch
      %23 = sbr.rel (0) target = $region9
    $region8: #{tpu_custom_call.1} parent=1 // pred_region
      %s25 = ssub.s32 256, 256
      %26 = vsyncadd [#allocation6], %s25
      %s27 = sshll.u32 [#allocation5], 4
      %s28 = int_to_ptr.vmem [resolvable:$true] %s27
      %33 = dma.hbm_to_vmem [thread:$0]  %s1, 256, %s28, [#allocation6], 128, 128, 8
    $region9: #{tpu_custom_call.1} parent=1 // pred_fallthru
      _
    // Predicated region
    $region10: #{tpu_custom_call.1} parent=1 // pred_check
      _
    $region11: #{tpu_custom_call.1} parent=1 // pred_check_branch
      %35 = sbr.rel (0) target = $region13
    $region12: #{tpu_custom_call.1} parent=1 // pred_region
      %36 = dma.done [#allocation3], 256
    $region13: #{tpu_custom_call.1} parent=1 // pred_fallthru
      _
    // Predicated region
    $region14: #{tpu_custom_call.1} parent=1 // pred_check
      _
    $region15: #{tpu_custom_call.1} parent=1 // pred_check_branch
      %38 = sbr.rel (0) target = $region17
    $region16: #{tpu_custom_call.1} parent=1 // pred_region
      %39 = dma.done [#allocation6], 256
    $region17: #{tpu_custom_call.1} parent=1 // pred_fallthru
      _
    %v40 = vld [vmem:[#allocation2] sm:$0xff]
    %v41 = vld [vmem:[#allocation2 + $0x8] sm:$0xff]
    %v42 = vld [vmem:[#allocation5] sm:$0xff]
    %v43 = vld [vmem:[#allocation5 + $0x8] sm:$0xff]
    %vm44 = vcmp.gt.f32.partialorder %v42, 0.0
    %vm45 = vcmp.gt.f32.partialorder %v43, 0.0
    %v46 = vlog2.pop %v42
    %v47 = vmul.f32 %v46, 0.6931472
    %v48 = vlog2.pop %v43
    %v49 = vmul.f32 %v48, 0.6931472
    %v50 = vlog2.pop %v40
    %v51 = vmul.f32 %v50, 0.6931472
    %v52 = vlog2.pop %v41
    %v53 = vmul.f32 %v52, 0.6931472
    %v54 = vsub.f32 %v47, %v51
    %v55 = vsub.f32 %v49, %v53
    %v56 = vmul.f32 %v42, %v54
    %v57 = vmul.f32 %v43, %v55
    %v58 = vsel %vm44, %v56, 0.0
    %v59 = vsel %vm45, %v57, 0.0
    %v60 = vadd.f32 %v58, %v59
    %v61 = vadd.f32 %v60, 0.0
    %62 = vst [vmem:[#allocation7] sm:$0xff] %v61
    // Predicated region
    $region18: #{tpu_custom_call.1} parent=1 // pred_check
      _
    $region19: #{tpu_custom_call.1} parent=1 // pred_check_branch
      %64 = sbr.rel (0) target = $region21
    $region20: #{tpu_custom_call.1} parent=1 // pred_region
      %s66 = ssub.s32 128, 128
      %67 = vsyncadd [#allocation4], %s66
      %s69 = sshll.u32 [#allocation7], 4
      %s70 = int_to_ptr.vmem [resolvable:$true] %s69
      %72 = dma.vmem_to_hbm [thread:$0]  %s70, 128, %s2, [#allocation4]
    $region21: #{tpu_custom_call.1} parent=1 // pred_fallthru
      _
    // Predicated region
    $region22: #{tpu_custom_call.1} parent=1 // pred_check
      _
    $region23: #{tpu_custom_call.1} parent=1 // pred_check_branch
      %74 = sbr.rel (0) target = $region25
    $region24: #{tpu_custom_call.1} parent=1 // pred_region
      %75 = dma.done [#allocation4], 128
    $region25: #{tpu_custom_call.1} parent=1 // pred_fallthru
      _
    %76 = vsyncpa [#allocation3], 1
    %77 = vsyncpa [#allocation6], 1
    %78 = vsyncpa [#allocation4], 1

</llo_original>
